<compile_context>
chip_gen: v7x
topology: tpu7x:2x2x1
jax: 0.10.0
libtpu: 0.0.40
codegen_flags: <defaults>
</compile_context>

<pallas_src>
import jax
import jax.numpy as jnp
from jax.experimental import pallas as pl
from jax.experimental.pallas import tpu as pltpu


def transition_kernel(x_ref, scale_ref, bias_ref, w_ref, o_ref):
    # x_ref:     (1, TH, W, Cin)        one row-tile of one batch element (NHWC)
    # scale_ref: (1, Cin)               folded BN scale  = gamma / sqrt(var + eps)
    # bias_ref:  (1, Cin)               folded BN bias   = beta - mean * scale
    # w_ref:     (Cin, Cout)            1x1 conv weight (transposed, * 0.25 folded in)
    # o_ref:     (1, TH//2, W//2, Cout)
    x = x_ref[0]                                     # (TH, W, Cin)
    scale = scale_ref[0]                             # (Cin,) -> broadcast over lanes
    bias = bias_ref[0]                               # (Cin,)

    # Inference-mode BatchNorm (folded) + ReLU, f32 on the VPU.
    y = jnp.maximum(x * scale + bias, 0.0)           # (TH, W, Cin)

    th, wd, cin = y.shape

    # 2x2 average pool BEFORE the 1x1 conv (pool commutes with the pointwise
    # conv; the 1/4 factor lives in w_ref).  Row pool splits only the major
    # axis (free); column pool is a small sublane-split on the already
    # row-halved, pre-matmul activations.
    yr = y.reshape(th // 2, 2, wd, cin).sum(axis=1)          # (TH//2, W, Cin)
    yc = yr.reshape(th // 2, wd // 2, 2, cin).sum(axis=2)    # (TH//2, W//2, Cin)

    # 1x1 convolution == per-pixel channel matmul on the MXU.
    z = jnp.dot(yc.reshape((th // 2) * (wd // 2), cin), w_ref[...],
                preferred_element_type=jnp.float32)          # (TH//2 * W//2, Cout)

    o_ref[0] = z.reshape(th // 2, wd // 2, -1).astype(o_ref.dtype)


def _pick_tile_h(H, W, Cin, Cout, budget_bytes=6 << 20):
    """Largest even row-tile TH dividing H whose double-buffered input/output
    blocks fit a conservative VMEM budget (safe on v5e/v6e/v7x defaults),
    preferring >= 2 grid steps along H for pipelining / megacore sharding."""
    candidates = [th for th in range(2, H + 1, 2) if H % th == 0]
    if not candidates:
        return H

    def fits(th):
        in_bytes = 2 * th * W * Cin * 4                       # double-buffered input block
        out_bytes = 2 * (th // 2) * (W // 2) * Cout * 4       # double-buffered output block
        return in_bytes + out_bytes <= budget_bytes

    fitting = [th for th in candidates if fits(th)] or [candidates[0]]
    multi_step = [th for th in fitting if H // th >= 2]
    return max(multi_step) if multi_step else max(fitting)


def transition_block(x_nchw, gamma, beta, running_mean, running_var, conv_w,
                     *, eps=1e-5, tile_h=None):
    """TransitionBlock forward.

    x_nchw: (N, Cin, H, W) float32
    conv_w: (Cout, Cin, 1, 1) float32   (PyTorch OIHW layout)
    returns (N, Cout, H//2, W//2) float32
    """
    N, Cin, H, W = x_nchw.shape
    Cout = conv_w.shape[0]
    # TODO(synk): odd spatial dims (PyTorch AvgPool2d floors) are not handled.
    assert H % 2 == 0 and W % 2 == 0, (H, W)

    # Fold inference-mode BatchNorm into a per-channel affine transform.
    # TODO(synk): training-mode BatchNorm (batch statistics) is not implemented;
    # this matches PyTorch eval() semantics.
    scale = gamma / jnp.sqrt(running_var + eps)               # (Cin,)
    bias = beta - running_mean * scale                        # (Cin,)

    # 1x1 conv weight (Cin, Cout) with the 2x2 average-pool 1/4 factor folded in.
    w = jnp.transpose(conv_w.reshape(Cout, Cin), (1, 0)) * 0.25

    # TODO(synk): in a full NHWC DenseNet these two HBM round-trip transposes
    # disappear; they are kept only to match the NCHW module interface.
    x = jnp.transpose(x_nchw, (0, 2, 3, 1))                   # NCHW -> NHWC

    if tile_h is None:
        tile_h = _pick_tile_h(H, W, Cin, Cout)
    assert H % tile_h == 0 and tile_h % 2 == 0, tile_h

    Hp, Wp, THp = H // 2, W // 2, tile_h // 2

    out_nhwc = pl.pallas_call(
        transition_kernel,
        out_shape=jax.ShapeDtypeStruct((N, Hp, Wp, Cout), x.dtype),
        grid=(N, H // tile_h),
        in_specs=[
            pl.BlockSpec((1, tile_h, W, Cin), lambda n, h: (n, h, 0, 0)),
            pl.BlockSpec((1, Cin), lambda n, h: (0, 0)),
            pl.BlockSpec((1, Cin), lambda n, h: (0, 0)),
            pl.BlockSpec((Cin, Cout), lambda n, h: (0, 0)),
        ],
        out_specs=pl.BlockSpec((1, THp, Wp, Cout), lambda n, h: (n, h, 0, 0)),
        compiler_params=pltpu.CompilerParams(
            dimension_semantics=("parallel", "parallel")),
    )(x, scale.reshape(1, Cin), bias.reshape(1, Cin), w)

    return jnp.transpose(out_nhwc, (0, 3, 1, 2))              # NHWC -> NCHW


def reference(x_nchw, gamma, beta, running_mean, running_var, conv_w, *, eps=1e-5):
    """Plain-JAX reference of the same forward pass (for correctness check)."""
    scale = gamma / jnp.sqrt(running_var + eps)
    bias = beta - running_mean * scale
    y = jnp.maximum(x_nchw * scale[None, :, None, None] + bias[None, :, None, None], 0.0)
    w2 = conv_w.reshape(conv_w.shape[0], conv_w.shape[1])     # (Cout, Cin)
    z = jnp.einsum("nchw,oc->nohw", y, w2)
    N, Cout, H, W = z.shape
    return z.reshape(N, Cout, H // 2, 2, W // 2, 2).mean(axis=(3, 5))


if __name__ == "__main__":
    # Small deterministic example consistent with the module:
    # in_channels = 4, plance = 8, batch = 2, spatial = 16x16.
    N, Cin, H, W = 2, 4, 16, 16
    plance = 8

    key = jax.random.PRNGKey(0)
    kx, kg, kb, km, kv, kw = jax.random.split(key, 6)

    x = jax.random.normal(kx, (N, Cin, H, W), dtype=jnp.float32)
    gamma = jax.random.normal(kg, (Cin,), dtype=jnp.float32) * 0.1 + 1.0
    beta = jax.random.normal(kb, (Cin,), dtype=jnp.float32) * 0.1
    running_mean = jax.random.normal(km, (Cin,), dtype=jnp.float32) * 0.1
    running_var = jnp.abs(jax.random.normal(kv, (Cin,), dtype=jnp.float32)) * 0.1 + 1.0
    conv_w = jax.random.normal(kw, (plance, Cin, 1, 1), dtype=jnp.float32) * 0.1

    out = transition_block(x, gamma, beta, running_mean, running_var, conv_w)
    out = jax.block_until_ready(out)

    ref = reference(x, gamma, beta, running_mean, running_var, conv_w)
    assert out.shape == (N, plance, H // 2, W // 2), out.shape
    assert jnp.allclose(out, ref, atol=1e-5, rtol=1e-5), float(jnp.max(jnp.abs(out - ref)))

    print("KERNEL_OK")
</pallas_src>

<mosaic_0001>
module attributes {stable_mosaic.version = 11 : i64} {
  func.func @transition_kernel(%arg0: i32, %arg1: i32, %arg2: memref<1x8x16x4xf32, #tpu.memory_space<vmem>>, %arg3: memref<1x4xf32, #tpu.memory_space<vmem>>, %arg4: memref<1x4xf32, #tpu.memory_space<vmem>>, %arg5: memref<4x8xf32, #tpu.memory_space<vmem>>, %arg6: memref<1x4x8x8xf32, #tpu.memory_space<vmem>>) attributes {dimension_semantics = [#tpu.dimension_semantics<parallel>, #tpu.dimension_semantics<parallel>], iteration_bounds = array<i64: 2, 2>, scalar_prefetch = 0 : i64, scratch_operands = 0 : i64, tpu.core_type = #tpu.core_type<tc>, window_params = [{transform_indices = @transform_0, window_bounds = array<i64: 1, 8, 16, 4>}, {pipeline_mode = #tpu.pipeline_mode<synchronous>, transform_indices = @transform_1, window_bounds = array<i64: 1, 4>}, {pipeline_mode = #tpu.pipeline_mode<synchronous>, transform_indices = @transform_2, window_bounds = array<i64: 1, 4>}, {pipeline_mode = #tpu.pipeline_mode<synchronous>, transform_indices = @transform_3, window_bounds = array<i64: 4, 8>}, {transform_indices = @transform_4, window_bounds = array<i64: 1, 4, 8, 8>}]} {
    %c0 = arith.constant 0 : index
    %c0_0 = arith.constant 0 : index
    %c0_1 = arith.constant 0 : index
    %c0_2 = arith.constant 0 : index
    %0 = vector.load %arg2[%c0, %c0_0, %c0_1, %c0_2] : memref<1x8x16x4xf32, #tpu.memory_space<vmem>>, vector<1x8x16x4xf32>
    %1 = vector.shape_cast %0 : vector<1x8x16x4xf32> to vector<8x16x4xf32>
    %c0_3 = arith.constant 0 : index
    %c0_4 = arith.constant 0 : index
    %2 = vector.load %arg3[%c0_3, %c0_4] : memref<1x4xf32, #tpu.memory_space<vmem>>, vector<1x4xf32>
    %3 = vector.shape_cast %2 : vector<1x4xf32> to vector<4xf32>
    %c0_5 = arith.constant 0 : index
    %c0_6 = arith.constant 0 : index
    %4 = vector.load %arg4[%c0_5, %c0_6] : memref<1x4xf32, #tpu.memory_space<vmem>>, vector<1x4xf32>
    %5 = vector.shape_cast %4 : vector<1x4xf32> to vector<4xf32>
    %6 = vector.shape_cast %3 : vector<4xf32> to vector<1x1x4xf32>
    %7 = vector.broadcast %6 : vector<1x1x4xf32> to vector<8x16x4xf32>
    %8 = arith.mulf %1, %7 : vector<8x16x4xf32>
    %9 = vector.shape_cast %5 : vector<4xf32> to vector<1x1x4xf32>
    %10 = vector.broadcast %9 : vector<1x1x4xf32> to vector<8x16x4xf32>
    %11 = arith.addf %8, %10 : vector<8x16x4xf32>
    %cst = arith.constant 0.000000e+00 : f32
    %12 = vector.broadcast %cst : f32 to vector<8x16x4xf32>
    %13 = arith.maximumf %11, %12 : vector<8x16x4xf32>
    %14 = vector.shape_cast %13 : vector<8x16x4xf32> to vector<4x2x16x4xf32>
    %cst_7 = arith.constant dense<0.000000e+00> : vector<4x16x4xf32>
    %15 = vector.multi_reduction <add>, %14, %cst_7 [1] : vector<4x2x16x4xf32> to vector<4x16x4xf32>
    %16 = vector.shape_cast %15 : vector<4x16x4xf32> to vector<4x8x2x4xf32>
    %cst_8 = arith.constant dense<0.000000e+00> : vector<4x8x4xf32>
    %17 = vector.multi_reduction <add>, %16, %cst_8 [2] : vector<4x8x2x4xf32> to vector<4x8x4xf32>
    %18 = vector.shape_cast %17 : vector<4x8x4xf32> to vector<32x4xf32>
    %c0_9 = arith.constant 0 : index
    %c0_10 = arith.constant 0 : index
    %19 = vector.load %arg5[%c0_9, %c0_10] : memref<4x8xf32, #tpu.memory_space<vmem>>, vector<4x8xf32>
    %cst_11 = arith.constant dense<0.000000e+00> : vector<32x8xf32>
    %20 = tpu.matmul %18, %19, %cst_11 {dimension_numbers = #tpu.dot_dimension_numbers<[1], [0], [0], [1], [0, 0, 1, 1], [], []>} : vector<32x4xf32>, vector<4x8xf32>, vector<32x8xf32> -> vector<32x8xf32>
    %21 = vector.shape_cast %20 : vector<32x8xf32> to vector<4x8x8xf32>
    %c0_12 = arith.constant 0 : index
    %c0_13 = arith.constant 0 : index
    %c0_14 = arith.constant 0 : index
    %c0_15 = arith.constant 0 : index
    %22 = vector.load %arg6[%c0_12, %c0_13, %c0_14, %c0_15] : memref<1x4x8x8xf32, #tpu.memory_space<vmem>>, vector<1x4x8x8xf32>
    %23 = vector.shape_cast %22 : vector<1x4x8x8xf32> to vector<4x8x8xf32>
    %24 = vector.shape_cast %21 : vector<4x8x8xf32> to vector<1x4x8x8xf32>
    tpu.vector_store %arg6[%c0_12, %c0_13, %c0_14, %c0_15], %24 {strides = array<i32>} : memref<1x4x8x8xf32, #tpu.memory_space<vmem>>, vector<1x4x8x8xf32>,
    return
  }
  func.func @transform_0(%arg0: i32, %arg1: i32) -> (i32, i32, i32, i32) {
    %c0_i32 = arith.constant 0 : i32
    %c0_i32_0 = arith.constant 0 : i32
    %c0_i32_1 = arith.constant 0 : i32
    return %arg0, %arg1, %c0_i32, %c0_i32_0 : i32, i32, i32, i32
  }
  func.func @transform_1(%arg0: i32, %arg1: i32) -> (i32, i32) {
    %c0_i32 = arith.constant 0 : i32
    %c0_i32_0 = arith.constant 0 : i32
    %c0_i32_1 = arith.constant 0 : i32
    return %c0_i32, %c0_i32_0 : i32, i32
  }
  func.func @transform_2(%arg0: i32, %arg1: i32) -> (i32, i32) {
    %c0_i32 = arith.constant 0 : i32
    %c0_i32_0 = arith.constant 0 : i32
    %c0_i32_1 = arith.constant 0 : i32
    return %c0_i32, %c0_i32_0 : i32, i32
  }
  func.func @transform_3(%arg0: i32, %arg1: i32) -> (i32, i32) {
    %c0_i32 = arith.constant 0 : i32
    %c0_i32_0 = arith.constant 0 : i32
    %c0_i32_1 = arith.constant 0 : i32
    return %c0_i32, %c0_i32_0 : i32, i32
  }
  func.func @transform_4(%arg0: i32, %arg1: i32) -> (i32, i32, i32, i32) {
    %c0_i32 = arith.constant 0 : i32
    %c0_i32_0 = arith.constant 0 : i32
    %c0_i32_1 = arith.constant 0 : i32
    return %arg0, %arg1, %c0_i32, %c0_i32_0 : i32, i32, i32, i32
  }
}

</mosaic_0001>

<llo_original>
// kernel: tpu_custom_call.1
$region0: #{tpu_custom_call.1}
  #allocation0 [shape = 'u32[]', space=smem, size = 0x4, offset = 0x4, fixed_abs, tag = 'smem constant byte address 0x4 - core index']
  #allocation1 [shape = 'u32[144,128]{1,0:T(1,128)}', space=vmem, size = 0x12000, scoped, tag = 'internal scratch']
  %s0 = inlined_call_operand.vmem [shape: f32[2,16,16,4], index: 0, kind: input, shape index: {}]
  %s1 = inlined_call_operand.vmem [shape: f32[1,4], index: 1, kind: input, shape index: {}]
  %s2 = inlined_call_operand.vmem [shape: f32[1,4], index: 2, kind: input, shape index: {}]
  %s3 = inlined_call_operand.vmem [shape: f32[4,8], index: 3, kind: input, shape index: {}]
  %s4 = inlined_call_operand.hbm [shape: f32[2,8,8,8], index: 4, kind: output, shape index: {}]
  %s5 = sld [smem:[#allocation0]]
  $region49: #{tpu_custom_call.1} parent=0
    _
  %s7 = ssub.s32 1, %s5
  %s8 = scalar_select 0, %s7, %s5
  $region1: #{tpu_custom_call.1} parent=0
    #allocation2 [shape = 'u8[32768]{0}', space=vmem, size = 0x8000, scoped, tag = 'output window, operand 0']
    #allocation3 [shape = 's32[2]{0}', space=sflag, size = 0x8, scoped, tag = 'scoped memory for tpu_custom_call.1']
    %9 = vsyncpa [#allocation3], 0
    %s10 = scalar_lea.sflag [#allocation3], 1
    %11 = vsyncpa %s10, 0
    loop: start=0, step=1, limit=6
    $region2: #{tpu_custom_call.1} parent=1 // loop_pre_header
      _
    $region3: #{tpu_custom_call.1} parent=1 // loop_header
      %s13 = sphi 0, %s17
      %p14 = scmp.ge.s32.totalorder %s13, 6
      %s20 = sphi 0, %s32
      %s21 = sphi 0, %s28
      %s22 = sphi 0, %s20
      %s23 = sphi 0, %s21
      %s24 = sphi 0, %s22
      %s25 = sphi 0, %s23
      %s37 = sphi 0, %s39
      %s40 = sphi 0, %s37
      %s41 = sphi 0, %s40
      %s57 = sphi 0, %s41
      %s61 = sphi 0, %s61
      %s63 = sphi 0, %s61
      %s64 = sphi 0, %s63
      %s78 = sphi 0, %s64
      %s82 = sphi 0, %s82
      %s84 = sphi 0, %s82
      %s85 = sphi 0, %s84
      %s99 = sphi 0, %s85
      %s103 = sphi 0, %s103
      %s105 = sphi 0, %s103
      %s106 = sphi 0, %s105
      %s120 = sphi 0, %s106
      %s128 = sphi 0, %s130
      %s131 = sphi 0, %s128
      %s132 = sphi 0, %s131
      %s148 = sphi 0, %s132
    $region4: #{tpu_custom_call.1} parent=1 // loop_header_branch
      %16 = sbr.rel (%p14) target = $region8
    $region5: #{tpu_custom_call.1} parent=1 // loop_body
      %s18 = ssub.s32 %s13, 1
      %s19 = ssub.s32 %s13, 2
      %s26 = sadd.s32 1, %s21
      %p27 = scmp.ge.s32.totalorder %s26, 2
      %s28 = scalar_select %p27, 0, %s26
      %s29 = sadd.s32 1, %s20
      %s30 = scalar_select %p27, %s29, %s20
      %p31 = scmp.ge.s32.totalorder %s30, 2
      %s32 = scalar_select %p31, 0, %s30
      %s33 = ssub.s32 %s20, %s32
      %s34 = ssub.s32 %s21, %s28
      %s35 = sor.u32 %s33, %s34
      %p36 = scmp.eq.s32.totalorder %s35, 0
      %s38 = sadd.s32 %s37, 1
      %s39 = scalar_select %p36, %s37, %s38
      %p42 = pneg %p36
      %p43 = scmp.eq.s32.totalorder %s13, 3
      %p44 = por %p42, %p43
      %p45 = scmp.ne.s32.totalorder %s37, %s40
      %p46 = scmp.eq.s32.totalorder %s13, 0
      %p47 = por %p45, %p46
      %p48 = scmp.ne.s32.totalorder %s37, %s40
      %p49 = scmp.eq.s32.totalorder %s18, 3
      %p50 = por %p48, %p49
      %p51 = scmp.ne.s32.totalorder %s40, %s41
      %p52 = scmp.eq.s32.totalorder %s18, 0
      %p53 = por %p51, %p52
      %p54 = scmp.ne.s32.totalorder %s40, %s41
      %p55 = scmp.eq.s32.totalorder %s19, 3
      %p56 = por %p54, %p55
      %p58 = scmp.ne.s32.totalorder %s41, %s57
      %p59 = scmp.eq.s32.totalorder %s19, 0
      %p60 = por %p58, %p59
      %s62 = sadd.s32 %s61, 1
      %p65 = scmp.eq.s32.totalorder %s13, 3
      %p66 = scmp.ne.s32.totalorder %s61, %s63
      %p67 = scmp.eq.s32.totalorder %s13, 0
      %p68 = por %p66, %p67
      %p69 = scmp.ne.s32.totalorder %s61, %s63
      %p70 = scmp.eq.s32.totalorder %s18, 3
      %p71 = por %p69, %p70
      %p72 = scmp.ne.s32.totalorder %s63, %s64
      %p73 = scmp.eq.s32.totalorder %s18, 0
      %p74 = por %p72, %p73
      %p75 = scmp.ne.s32.totalorder %s63, %s64
      %p76 = scmp.eq.s32.totalorder %s19, 3
      %p77 = por %p75, %p76
      %p79 = scmp.ne.s32.totalorder %s64, %s78
      %p80 = scmp.eq.s32.totalorder %s19, 0
      %p81 = por %p79, %p80
      %s83 = sadd.s32 %s82, 1
      %p86 = scmp.eq.s32.totalorder %s13, 3
      %p87 = scmp.ne.s32.totalorder %s82, %s84
      %p88 = scmp.eq.s32.totalorder %s13, 0
      %p89 = por %p87, %p88
      %p90 = scmp.ne.s32.totalorder %s82, %s84
      %p91 = scmp.eq.s32.totalorder %s18, 3
      %p92 = por %p90, %p91
      %p93 = scmp.ne.s32.totalorder %s84, %s85
      %p94 = scmp.eq.s32.totalorder %s18, 0
      %p95 = por %p93, %p94
      %p96 = scmp.ne.s32.totalorder %s84, %s85
      %p97 = scmp.eq.s32.totalorder %s19, 3
      %p98 = por %p96, %p97
      %p100 = scmp.ne.s32.totalorder %s85, %s99
      %p101 = scmp.eq.s32.totalorder %s19, 0
      %p102 = por %p100, %p101
      %s104 = sadd.s32 %s103, 1
      %p107 = scmp.eq.s32.totalorder %s13, 3
      %p108 = scmp.ne.s32.totalorder %s103, %s105
      %p109 = scmp.eq.s32.totalorder %s13, 0
      %p110 = por %p108, %p109
      %p111 = scmp.ne.s32.totalorder %s103, %s105
      %p112 = scmp.eq.s32.totalorder %s18, 3
      %p113 = por %p111, %p112
      %p114 = scmp.ne.s32.totalorder %s105, %s106
      %p115 = scmp.eq.s32.totalorder %s18, 0
      %p116 = por %p114, %p115
      %p117 = scmp.ne.s32.totalorder %s105, %s106
      %p118 = scmp.eq.s32.totalorder %s19, 3
      %p119 = por %p117, %p118
      %p121 = scmp.ne.s32.totalorder %s106, %s120
      %p122 = scmp.eq.s32.totalorder %s19, 0
      %p123 = por %p121, %p122
      %s124 = ssub.s32 %s20, %s32
      %s125 = ssub.s32 %s21, %s28
      %s126 = sor.u32 %s124, %s125
      %p127 = scmp.eq.s32.totalorder %s126, 0
      %s129 = sadd.s32 %s128, 1
      %s130 = scalar_select %p127, %s128, %s129
      %p133 = pneg %p127
      %p134 = scmp.eq.s32.totalorder %s13, 3
      %p135 = por %p133, %p134
      %p136 = scmp.ne.s32.totalorder %s128, %s131
      %p137 = scmp.eq.s32.totalorder %s13, 0
      %p138 = por %p136, %p137
      %p139 = scmp.ne.s32.totalorder %s128, %s131
      %p140 = scmp.eq.s32.totalorder %s18, 3
      %p141 = por %p139, %p140
      %p142 = scmp.ne.s32.totalorder %s131, %s132
      %p143 = scmp.eq.s32.totalorder %s18, 0
      %p144 = por %p142, %p143
      %p145 = scmp.ne.s32.totalorder %s131, %s132
      %p146 = scmp.eq.s32.totalorder %s19, 3
      %p147 = por %p145, %p146
      %p149 = scmp.ne.s32.totalorder %s132, %s148
      %p150 = scmp.eq.s32.totalorder %s19, 0
      %p151 = por %p149, %p150
      %p152 = scmp.le.s32.totalorder 1, %s13
      %p153 = scmp.lt.s32.totalorder %s13, 5
      %p154 = pnand %p152, %p153
      %p155 = pneg %p154
      // Predicated region
      $region9: #{tpu_custom_call.1} parent=5 // pred_check
        _
      $region10: #{tpu_custom_call.1} parent=5 // pred_check_branch
        %157 = sbr.rel (%p154) target = $region12
      $region11: #{tpu_custom_call.1} parent=5 // pred_region
        %s158 = ssub.s32 %s13, 1
        // Predicated region
        $region13: #{tpu_custom_call.1} parent=11 // pred_check
          %p159 = pneg %p74
        $region14: #{tpu_custom_call.1} parent=11 // pred_check_branch
          %161 = sbr.rel (%p159) target = $region16
        $region15: #{tpu_custom_call.1} parent=11 // pred_region
          _
        $region16: #{tpu_custom_call.1} parent=11 // pred_fallthru
          _
        // Predicated region
        $region17: #{tpu_custom_call.1} parent=11 // pred_check
          %p162 = pneg %p95
        $region18: #{tpu_custom_call.1} parent=11 // pred_check_branch
          %164 = sbr.rel (%p162) target = $region20
        $region19: #{tpu_custom_call.1} parent=11 // pred_region
          _
        $region20: #{tpu_custom_call.1} parent=11 // pred_fallthru
          _
        // Predicated region
        $region21: #{tpu_custom_call.1} parent=11 // pred_check
          %p165 = pneg %p116
        $region22: #{tpu_custom_call.1} parent=11 // pred_check_branch
          %167 = sbr.rel (%p165) target = $region24
        $region23: #{tpu_custom_call.1} parent=11 // pred_region
          _
        $region24: #{tpu_custom_call.1} parent=11 // pred_fallthru
          _
      $region12: #{tpu_custom_call.1} parent=5 // pred_fallthru
        _
      %p168 = scmp.lt.s32.totalorder %s13, 4
      // Predicated region
      $region25: #{tpu_custom_call.1} parent=5 // pred_check
        %p169 = pneg %p168
      $region26: #{tpu_custom_call.1} parent=5 // pred_check_branch
        %171 = sbr.rel (%p169) target = $region28
      $region27: #{tpu_custom_call.1} parent=5 // pred_region
        // Predicated region
        $region29: #{tpu_custom_call.1} parent=27 // pred_check
          %p172 = pneg %p47
        $region30: #{tpu_custom_call.1} parent=27 // pred_check_branch
          %174 = sbr.rel (%p172) target = $region32
        $region31: #{tpu_custom_call.1} parent=27 // pred_region
          %s175 = smul.u32 8, %s21
          %p176 = scmp.lt.s32.totalorder %s20, 1
          %s177 = scalar_select %p176, %s20, 1
          %p178 = scmp.lt.s32.totalorder %s175, 15
          %s179 = scalar_select %p178, %s175, 15
          %s180 = smul.addr %s179, 2
          %s181 = smul.addr %s177, 32
          %s182 = sadd.s32 %s180, %s181
          %s183 = smul.addr %s182, 8
          %s184 = scalar_lea.vmem %s0, %s183
          %s185 = smul.u32 8, %s21
        $region32: #{tpu_custom_call.1} parent=27 // pred_fallthru
          _
      $region28: #{tpu_custom_call.1} parent=5 // pred_fallthru
        _
      %p186 = scmp.le.s32.totalorder 1, %s13
      %p187 = scmp.lt.s32.totalorder %s13, 5
      %p188 = pnand %p186, %p187
      %p189 = pneg %p188
      // Predicated region
      $region33: #{tpu_custom_call.1} parent=5 // pred_check
        _
      $region34: #{tpu_custom_call.1} parent=5 // pred_check_branch
        %191 = sbr.rel (%p188) target = $region36
      $region35: #{tpu_custom_call.1} parent=5 // pred_region
        %s192 = ssub.s32 %s13, 1
        %s193 = smul.u32 8, %s23
        %p194 = scmp.lt.s32.totalorder %s22, 1
        %s195 = scalar_select %p194, %s22, 1
        %p196 = scmp.lt.s32.totalorder %s193, 15
        %s197 = scalar_select %p196, %s193, 15
        %s198 = smul.addr %s197, 2
        %s199 = smul.addr %s195, 32
        %s200 = sadd.s32 %s198, %s199
        %s201 = smul.addr %s200, 8
        %s202 = scalar_lea.vmem %s0, %s201
        %p203 = pneg %p53
        %p204 = pneg %p50
        %p205 = pneg %p74
        %p206 = pneg %p71
        %p207 = pneg %p95
        %p208 = pneg %p92
        %p209 = pneg %p116
        %p210 = pneg %p113
        %p211 = pneg %p144
        %p212 = pneg %p141
        %s213 = sand.u32 %s131, 1
        %s214 = scalar_lea.sflag [#allocation3], %s213
        %s215 = sand.u32 %s131, 1
        %s216 = smul.addr %s215, 32
        %s217 = scalar_lea.vmem [#allocation2], %s216
        %s218 = smul.u32 8, %s23
        %p219 = scmp.lt.s32.totalorder %s22, 1
        %s220 = scalar_select %p219, %s22, 1
        %p221 = scmp.lt.s32.totalorder %s218, 15
        %s222 = scalar_select %p221, %s218, 15
        %s223 = smul.addr %s222, 2
        %s224 = smul.addr %s220, 32
        %s225 = sadd.s32 %s223, %s224
        %s226 = smul.addr %s225, 8
        %s227 = scalar_lea.vmem %s0, %s226
        %s228 = smul.u32 8, %s23
        %s229 = smul.u32 4, %s23
        %v230 = vld [vmem:[%s227] sm:$0xff]
        %v231 = vld [vmem:[%s227 + $0x8] sm:$0xff]
        %v232 = vld [vmem:[%s227 + $0x10] sm:$0xff]
        %v233 = vld [vmem:[%s227 + $0x18] sm:$0xff]
        %v234 = vld [vmem:[%s227 + $0x20] sm:$0xff]
        %v235 = vld [vmem:[%s227 + $0x28] sm:$0xff]
        %v236 = vld [vmem:[%s227 + $0x30] sm:$0xff]
        %v237 = vld [vmem:[%s227 + $0x38] sm:$0xff]
        %v238 = vld [vmem:[%s227 + $0x40] sm:$0xff]
        %v239 = vld [vmem:[%s227 + $0x48] sm:$0xff]
        %v240 = vld [vmem:[%s227 + $0x50] sm:$0xff]
        %v241 = vld [vmem:[%s227 + $0x58] sm:$0xff]
        %v242 = vld [vmem:[%s227 + $0x60] sm:$0xff]
        %v243 = vld [vmem:[%s227 + $0x68] sm:$0xff]
        %v244 = vld [vmem:[%s227 + $0x70] sm:$0xff]
        %v245 = vld [vmem:[%s227 + $0x78] sm:$0xff]
        %v246 = vld [vmem:[%s1] sm:$0x1]
        %v247 = vld [vmem:[%s2] sm:$0x1]
        %v249 = vlaneseq
        %v250 = vshrl.u32 %v249, 7
        %v251 = vsub.s32 0, %v250
        %v252 = vrot.slane %v246, %v251
        %v254 = vmul.f32 %v230, %v252
        %v255 = vmul.f32 %v231, %v252
        %v256 = vmul.f32 %v232, %v252
        %v257 = vmul.f32 %v233, %v252
        %v258 = vmul.f32 %v234, %v252
        %v259 = vmul.f32 %v235, %v252
        %v260 = vmul.f32 %v236, %v252
        %v261 = vmul.f32 %v237, %v252
        %v262 = vmul.f32 %v238, %v252
        %v263 = vmul.f32 %v239, %v252
        %v264 = vmul.f32 %v240, %v252
        %v265 = vmul.f32 %v241, %v252
        %v266 = vmul.f32 %v242, %v252
        %v267 = vmul.f32 %v243, %v252
        %v268 = vmul.f32 %v244, %v252
        %v269 = vmul.f32 %v245, %v252
        %v271 = vlaneseq
        %v272 = vshrl.u32 %v271, 7
        %v273 = vsub.s32 0, %v272
        %v274 = vrot.slane %v247, %v273
        %v276 = vadd.f32 %v254, %v274
        %v277 = vadd.f32 %v255, %v274
        %v278 = vadd.f32 %v256, %v274
        %v279 = vadd.f32 %v257, %v274
        %v280 = vadd.f32 %v258, %v274
        %v281 = vadd.f32 %v259, %v274
        %v282 = vadd.f32 %v260, %v274
        %v283 = vadd.f32 %v261, %v274
        %v284 = vadd.f32 %v262, %v274
        %v285 = vadd.f32 %v263, %v274
        %v286 = vadd.f32 %v264, %v274
        %v287 = vadd.f32 %v265, %v274
        %v288 = vadd.f32 %v266, %v274
        %v289 = vadd.f32 %v267, %v274
        %v290 = vadd.f32 %v268, %v274
        %v291 = vadd.f32 %v269, %v274
        %v292 = vmax.f32 %v276, 0.0
        %v293 = vmax.f32 %v277, 0.0
        %v294 = vmax.f32 %v278, 0.0
        %v295 = vmax.f32 %v279, 0.0
        %v296 = vmax.f32 %v280, 0.0
        %v297 = vmax.f32 %v281, 0.0
        %v298 = vmax.f32 %v282, 0.0
        %v299 = vmax.f32 %v283, 0.0
        %v300 = vmax.f32 %v284, 0.0
        %v301 = vmax.f32 %v285, 0.0
        %v302 = vmax.f32 %v286, 0.0
        %v303 = vmax.f32 %v287, 0.0
        %v304 = vmax.f32 %v288, 0.0
        %v305 = vmax.f32 %v289, 0.0
        %v306 = vmax.f32 %v290, 0.0
        %v307 = vmax.f32 %v291, 0.0
        %vm308 = vcmask 31744
        %v309 = vsel %vm308, %v292, 0.0
        %v310 = vsel %vm308, %v294, 0.0
        %v311 = vadd.f32 %v309, %v310
        %v312 = vsel %vm308, %v293, 0.0
        %v313 = vsel %vm308, %v295, 0.0
        %v314 = vadd.f32 %v312, %v313
        %v315 = vsel %vm308, %v296, 0.0
        %v316 = vsel %vm308, %v298, 0.0
        %v317 = vadd.f32 %v315, %v316
        %v318 = vsel %vm308, %v297, 0.0
        %v319 = vsel %vm308, %v299, 0.0
        %v320 = vadd.f32 %v318, %v319
        %v321 = vsel %vm308, %v300, 0.0
        %v322 = vsel %vm308, %v302, 0.0
        %v323 = vadd.f32 %v321, %v322
        %v324 = vsel %vm308, %v301, 0.0
        %v325 = vsel %vm308, %v303, 0.0
        %v326 = vadd.f32 %v324, %v325
        %v327 = vsel %vm308, %v304, 0.0
        %v328 = vsel %vm308, %v306, 0.0
        %v329 = vadd.f32 %v327, %v328
        %v330 = vsel %vm308, %v305, 0.0
        %v331 = vsel %vm308, %v307, 0.0
        %v332 = vadd.f32 %v330, %v331
        %v341 = vcombine.high %v311, %v311
        %v343 = vunpack.c.l.s4 1983009808
        %v344 = vunpack.c.0.s8 %v343
        %v345 = vlaneseq
        %v346 = vshrl.u32 %v345, 7
        %v347 = vsub.s32 %v344, %v346
        %v348 = vrot.slane %v311, %v347
        %v350 = vunpack.c.l.s4 1983009808
        %v351 = vunpack.c.0.s8 %v350
        %v352 = vlaneseq
        %v353 = vshrl.u32 %v352, 7
        %v354 = vsub.s32 %v351, %v353
        %v355 = vrot.slane %v341, %v354
        %v356 = vcombine.high %v348, %v348
        %v357 = vcombine.high %v355, %v355
        %v358 = vcombine.high %v314, %v314
        %v360 = vunpack.c.l.s4 1983009808
        %v361 = vunpack.c.0.s8 %v360
        %v362 = vlaneseq
        %v363 = vshrl.u32 %v362, 7
        %v364 = vsub.s32 %v361, %v363
        %v365 = vrot.slane %v314, %v364
        %v367 = vunpack.c.l.s4 1983009808
        %v368 = vunpack.c.0.s8 %v367
        %v369 = vlaneseq
        %v370 = vshrl.u32 %v369, 7
        %v371 = vsub.s32 %v368, %v370
        %v372 = vrot.slane %v358, %v371
        %v373 = vcombine.high %v365, %v365
        %v374 = vcombine.high %v372, %v372
        %v375 = vcombine.high %v317, %v317
        %v377 = vunpack.c.l.s4 1983009808
        %v378 = vunpack.c.0.s8 %v377
        %v379 = vlaneseq
        %v380 = vshrl.u32 %v379, 7
        %v381 = vsub.s32 %v378, %v380
        %v382 = vrot.slane %v317, %v381
        %v384 = vunpack.c.l.s4 1983009808
        %v385 = vunpack.c.0.s8 %v384
        %v386 = vlaneseq
        %v387 = vshrl.u32 %v386, 7
        %v388 = vsub.s32 %v385, %v387
        %v389 = vrot.slane %v375, %v388
        %v390 = vcombine.high %v382, %v382
        %v391 = vcombine.high %v389, %v389
        %v392 = vcombine.high %v320, %v320
        %v394 = vunpack.c.l.s4 1983009808
        %v395 = vunpack.c.0.s8 %v394
        %v396 = vlaneseq
        %v397 = vshrl.u32 %v396, 7
        %v398 = vsub.s32 %v395, %v397
        %v399 = vrot.slane %v320, %v398
        %v401 = vunpack.c.l.s4 1983009808
        %v402 = vunpack.c.0.s8 %v401
        %v403 = vlaneseq
        %v404 = vshrl.u32 %v403, 7
        %v405 = vsub.s32 %v402, %v404
        %v406 = vrot.slane %v392, %v405
        %v407 = vcombine.high %v399, %v399
        %v408 = vcombine.high %v406, %v406
        %v409 = vcombine.high %v323, %v323
        %v411 = vunpack.c.l.s4 1983009808
        %v412 = vunpack.c.0.s8 %v411
        %v413 = vlaneseq
        %v414 = vshrl.u32 %v413, 7
        %v415 = vsub.s32 %v412, %v414
        %v416 = vrot.slane %v323, %v415
        %v418 = vunpack.c.l.s4 1983009808
        %v419 = vunpack.c.0.s8 %v418
        %v420 = vlaneseq
        %v421 = vshrl.u32 %v420, 7
        %v422 = vsub.s32 %v419, %v421
        %v423 = vrot.slane %v409, %v422
        %v424 = vcombine.high %v416, %v416
        %v425 = vcombine.high %v423, %v423
        %v426 = vcombine.high %v326, %v326
        %v428 = vunpack.c.l.s4 1983009808
        %v429 = vunpack.c.0.s8 %v428
        %v430 = vlaneseq
        %v431 = vshrl.u32 %v430, 7
        %v432 = vsub.s32 %v429, %v431
        %v433 = vrot.slane %v326, %v432
        %v435 = vunpack.c.l.s4 1983009808
        %v436 = vunpack.c.0.s8 %v435
        %v437 = vlaneseq
        %v438 = vshrl.u32 %v437, 7
        %v439 = vsub.s32 %v436, %v438
        %v440 = vrot.slane %v426, %v439
        %v441 = vcombine.high %v433, %v433
        %v442 = vcombine.high %v440, %v440
        %v443 = vcombine.high %v329, %v329
        %v445 = vunpack.c.l.s4 1983009808
        %v446 = vunpack.c.0.s8 %v445
        %v447 = vlaneseq
        %v448 = vshrl.u32 %v447, 7
        %v449 = vsub.s32 %v446, %v448
        %v450 = vrot.slane %v329, %v449
        %v452 = vunpack.c.l.s4 1983009808
        %v453 = vunpack.c.0.s8 %v452
        %v454 = vlaneseq
        %v455 = vshrl.u32 %v454, 7
        %v456 = vsub.s32 %v453, %v455
        %v457 = vrot.slane %v443, %v456
        %v458 = vcombine.high %v450, %v450
        %v459 = vcombine.high %v457, %v457
        %v460 = vcombine.high %v332, %v332
        %v462 = vunpack.c.l.s4 1983009808
        %v463 = vunpack.c.0.s8 %v462
        %v464 = vlaneseq
        %v465 = vshrl.u32 %v464, 7
        %v466 = vsub.s32 %v463, %v465
        %v467 = vrot.slane %v332, %v466
        %v469 = vunpack.c.l.s4 1983009808
        %v470 = vunpack.c.0.s8 %v469
        %v471 = vlaneseq
        %v472 = vshrl.u32 %v471, 7
        %v473 = vsub.s32 %v470, %v472
        %v474 = vrot.slane %v460, %v473
        %v475 = vcombine.high %v467, %v467
        %v476 = vcombine.high %v474, %v474
        %vm509 = vcmask 25600
        %v510 = vsel %vm509, %v348, 0.0
        %v511 = vrot.slane %v510, 4
        %v512 = vadd.f32 %v510, %v511
        %v513 = vrot.slane %v512, 2
        %v514 = vadd.f32 %v512, %v513
        %v515 = vrot.slane %v514, 1
        %v516 = vadd.f32 %v514, %v515
        %v517 = vsel %vm509, %v356, 0.0
        %v518 = vrot.slane %v517, 4
        %v519 = vadd.f32 %v517, %v518
        %v520 = vrot.slane %v519, 2
        %v521 = vadd.f32 %v519, %v520
        %v522 = vrot.slane %v521, 1
        %v523 = vadd.f32 %v521, %v522
        %v524 = vsel %vm509, %v355, 0.0
        %v525 = vrot.slane %v524, 4
        %v526 = vadd.f32 %v524, %v525
        %v527 = vrot.slane %v526, 2
        %v528 = vadd.f32 %v526, %v527
        %v529 = vrot.slane %v528, 1
        %v530 = vadd.f32 %v528, %v529
        %v531 = vsel %vm509, %v357, 0.0
        %v532 = vrot.slane %v531, 4
        %v533 = vadd.f32 %v531, %v532
        %v534 = vrot.slane %v533, 2
        %v535 = vadd.f32 %v533, %v534
        %v536 = vrot.slane %v535, 1
        %v537 = vadd.f32 %v535, %v536
        %v538 = vsel %vm509, %v365, 0.0
        %v539 = vrot.slane %v538, 4
        %v540 = vadd.f32 %v538, %v539
        %v541 = vrot.slane %v540, 2
        %v542 = vadd.f32 %v540, %v541
        %v543 = vrot.slane %v542, 1
        %v544 = vadd.f32 %v542, %v543
        %v545 = vsel %vm509, %v373, 0.0
        %v546 = vrot.slane %v545, 4
        %v547 = vadd.f32 %v545, %v546
        %v548 = vrot.slane %v547, 2
        %v549 = vadd.f32 %v547, %v548
        %v550 = vrot.slane %v549, 1
        %v551 = vadd.f32 %v549, %v550
        %v552 = vsel %vm509, %v372, 0.0
        %v553 = vrot.slane %v552, 4
        %v554 = vadd.f32 %v552, %v553
        %v555 = vrot.slane %v554, 2
        %v556 = vadd.f32 %v554, %v555
        %v557 = vrot.slane %v556, 1
        %v558 = vadd.f32 %v556, %v557
        %v559 = vsel %vm509, %v374, 0.0
        %v560 = vrot.slane %v559, 4
        %v561 = vadd.f32 %v559, %v560
        %v562 = vrot.slane %v561, 2
        %v563 = vadd.f32 %v561, %v562
        %v564 = vrot.slane %v563, 1
        %v565 = vadd.f32 %v563, %v564
        %v566 = vsel %vm509, %v382, 0.0
        %v567 = vrot.slane %v566, 4
        %v568 = vadd.f32 %v566, %v567
        %v569 = vrot.slane %v568, 2
        %v570 = vadd.f32 %v568, %v569
        %v571 = vrot.slane %v570, 1
        %v572 = vadd.f32 %v570, %v571
        %v573 = vsel %vm509, %v390, 0.0
        %v574 = vrot.slane %v573, 4
        %v575 = vadd.f32 %v573, %v574
        %v576 = vrot.slane %v575, 2
        %v577 = vadd.f32 %v575, %v576
        %v578 = vrot.slane %v577, 1
        %v579 = vadd.f32 %v577, %v578
        %v580 = vsel %vm509, %v389, 0.0
        %v581 = vrot.slane %v580, 4
        %v582 = vadd.f32 %v580, %v581
        %v583 = vrot.slane %v582, 2
        %v584 = vadd.f32 %v582, %v583
        %v585 = vrot.slane %v584, 1
        %v586 = vadd.f32 %v584, %v585
        %v587 = vsel %vm509, %v391, 0.0
        %v588 = vrot.slane %v587, 4
        %v589 = vadd.f32 %v587, %v588
        %v590 = vrot.slane %v589, 2
        %v591 = vadd.f32 %v589, %v590
        %v592 = vrot.slane %v591, 1
        %v593 = vadd.f32 %v591, %v592
        %v594 = vsel %vm509, %v399, 0.0
        %v595 = vrot.slane %v594, 4
        %v596 = vadd.f32 %v594, %v595
        %v597 = vrot.slane %v596, 2
        %v598 = vadd.f32 %v596, %v597
        %v599 = vrot.slane %v598, 1
        %v600 = vadd.f32 %v598, %v599
        %v601 = vsel %vm509, %v407, 0.0
        %v602 = vrot.slane %v601, 4
        %v603 = vadd.f32 %v601, %v602
        %v604 = vrot.slane %v603, 2
        %v605 = vadd.f32 %v603, %v604
        %v606 = vrot.slane %v605, 1
        %v607 = vadd.f32 %v605, %v606
        %v608 = vsel %vm509, %v406, 0.0
        %v609 = vrot.slane %v608, 4
        %v610 = vadd.f32 %v608, %v609
        %v611 = vrot.slane %v610, 2
        %v612 = vadd.f32 %v610, %v611
        %v613 = vrot.slane %v612, 1
        %v614 = vadd.f32 %v612, %v613
        %v615 = vsel %vm509, %v408, 0.0
        %v616 = vrot.slane %v615, 4
        %v617 = vadd.f32 %v615, %v616
        %v618 = vrot.slane %v617, 2
        %v619 = vadd.f32 %v617, %v618
        %v620 = vrot.slane %v619, 1
        %v621 = vadd.f32 %v619, %v620
        %v622 = vsel %vm509, %v416, 0.0
        %v623 = vrot.slane %v622, 4
        %v624 = vadd.f32 %v622, %v623
        %v625 = vrot.slane %v624, 2
        %v626 = vadd.f32 %v624, %v625
        %v627 = vrot.slane %v626, 1
        %v628 = vadd.f32 %v626, %v627
        %v629 = vsel %vm509, %v424, 0.0
        %v630 = vrot.slane %v629, 4
        %v631 = vadd.f32 %v629, %v630
        %v632 = vrot.slane %v631, 2
        %v633 = vadd.f32 %v631, %v632
        %v634 = vrot.slane %v633, 1
        %v635 = vadd.f32 %v633, %v634
        %v636 = vsel %vm509, %v423, 0.0
        %v637 = vrot.slane %v636, 4
        %v638 = vadd.f32 %v636, %v637
        %v639 = vrot.slane %v638, 2
        %v640 = vadd.f32 %v638, %v639
        %v641 = vrot.slane %v640, 1
        %v642 = vadd.f32 %v640, %v641
        %v643 = vsel %vm509, %v425, 0.0
        %v644 = vrot.slane %v643, 4
        %v645 = vadd.f32 %v643, %v644
        %v646 = vrot.slane %v645, 2
        %v647 = vadd.f32 %v645, %v646
        %v648 = vrot.slane %v647, 1
        %v649 = vadd.f32 %v647, %v648
        %v650 = vsel %vm509, %v433, 0.0
        %v651 = vrot.slane %v650, 4
        %v652 = vadd.f32 %v650, %v651
        %v653 = vrot.slane %v652, 2
        %v654 = vadd.f32 %v652, %v653
        %v655 = vrot.slane %v654, 1
        %v656 = vadd.f32 %v654, %v655
        %v657 = vsel %vm509, %v441, 0.0
        %v658 = vrot.slane %v657, 4
        %v659 = vadd.f32 %v657, %v658
        %v660 = vrot.slane %v659, 2
        %v661 = vadd.f32 %v659, %v660
        %v662 = vrot.slane %v661, 1
        %v663 = vadd.f32 %v661, %v662
        %v664 = vsel %vm509, %v440, 0.0
        %v665 = vrot.slane %v664, 4
        %v666 = vadd.f32 %v664, %v665
        %v667 = vrot.slane %v666, 2
        %v668 = vadd.f32 %v666, %v667
        %v669 = vrot.slane %v668, 1
        %v670 = vadd.f32 %v668, %v669
        %v671 = vsel %vm509, %v442, 0.0
        %v672 = vrot.slane %v671, 4
        %v673 = vadd.f32 %v671, %v672
        %v674 = vrot.slane %v673, 2
        %v675 = vadd.f32 %v673, %v674
        %v676 = vrot.slane %v675, 1
        %v677 = vadd.f32 %v675, %v676
        %v678 = vsel %vm509, %v450, 0.0
        %v679 = vrot.slane %v678, 4
        %v680 = vadd.f32 %v678, %v679
        %v681 = vrot.slane %v680, 2
        %v682 = vadd.f32 %v680, %v681
        %v683 = vrot.slane %v682, 1
        %v684 = vadd.f32 %v682, %v683
        %v685 = vsel %vm509, %v458, 0.0
        %v686 = vrot.slane %v685, 4
        %v687 = vadd.f32 %v685, %v686
        %v688 = vrot.slane %v687, 2
        %v689 = vadd.f32 %v687, %v688
        %v690 = vrot.slane %v689, 1
        %v691 = vadd.f32 %v689, %v690
        %v692 = vsel %vm509, %v457, 0.0
        %v693 = vrot.slane %v692, 4
        %v694 = vadd.f32 %v692, %v693
        %v695 = vrot.slane %v694, 2
        %v696 = vadd.f32 %v694, %v695
        %v697 = vrot.slane %v696, 1
        %v698 = vadd.f32 %v696, %v697
        %v699 = vsel %vm509, %v459, 0.0
        %v700 = vrot.slane %v699, 4
        %v701 = vadd.f32 %v699, %v700
        %v702 = vrot.slane %v701, 2
        %v703 = vadd.f32 %v701, %v702
        %v704 = vrot.slane %v703, 1
        %v705 = vadd.f32 %v703, %v704
        %v706 = vsel %vm509, %v467, 0.0
        %v707 = vrot.slane %v706, 4
        %v708 = vadd.f32 %v706, %v707
        %v709 = vrot.slane %v708, 2
        %v710 = vadd.f32 %v708, %v709
        %v711 = vrot.slane %v710, 1
        %v712 = vadd.f32 %v710, %v711
        %v713 = vsel %vm509, %v475, 0.0
        %v714 = vrot.slane %v713, 4
        %v715 = vadd.f32 %v713, %v714
        %v716 = vrot.slane %v715, 2
        %v717 = vadd.f32 %v715, %v716
        %v718 = vrot.slane %v717, 1
        %v719 = vadd.f32 %v717, %v718
        %v720 = vsel %vm509, %v474, 0.0
        %v721 = vrot.slane %v720, 4
        %v722 = vadd.f32 %v720, %v721
        %v723 = vrot.slane %v722, 2
        %v724 = vadd.f32 %v722, %v723
        %v725 = vrot.slane %v724, 1
        %v726 = vadd.f32 %v724, %v725
        %v727 = vsel %vm509, %v476, 0.0
        %v728 = vrot.slane %v727, 4
        %v729 = vadd.f32 %v727, %v728
        %v730 = vrot.slane %v729, 2
        %v731 = vadd.f32 %v729, %v730
        %v732 = vrot.slane %v731, 1
        %v733 = vadd.f32 %v731, %v732
        %v734 = vld [vmem:[%s3] sm:$0xf]
        %vm767 = vcmask 1041409
        %v768 = vsel %vm767, %v523, %v516
        %vm769 = vcmask 1042434
        %v770 = vsel %vm769, %v530, %v768
        %vm771 = vcmask 1043459
        %v772 = vsel %vm771, %v537, %v770
        %vm773 = vcmask 1044484
        %v774 = vsel %vm773, %v544, %v772
        %vm775 = vcmask 1045509
        %v776 = vsel %vm775, %v551, %v774
        %vm777 = vcmask 1046534
        %v778 = vsel %vm777, %v558, %v776
        %vm779 = vcmask 1047559
        %v780 = vsel %vm779, %v565, %v778
        %v781 = vsel %vm767, %v579, %v572
        %v782 = vsel %vm769, %v586, %v781
        %v783 = vsel %vm771, %v593, %v782
        %v784 = vsel %vm773, %v600, %v783
        %v785 = vsel %vm775, %v607, %v784
        %v786 = vsel %vm777, %v614, %v785
        %v787 = vsel %vm779, %v621, %v786
        %v788 = vsel %vm767, %v635, %v628
        %v789 = vsel %vm769, %v642, %v788
        %v790 = vsel %vm771, %v649, %v789
        %v791 = vsel %vm773, %v656, %v790
        %v792 = vsel %vm775, %v663, %v791
        %v793 = vsel %vm777, %v670, %v792
        %v794 = vsel %vm779, %v677, %v793
        %v795 = vsel %vm767, %v691, %v684
        %v796 = vsel %vm769, %v698, %v795
        %v797 = vsel %vm771, %v705, %v796
        %v798 = vsel %vm773, %v712, %v797
        %v799 = vsel %vm775, %v719, %v798
        %v800 = vsel %vm777, %v726, %v799
        %v801 = vsel %vm779, %v733, %v800
        %v802 = vsel %vm308, %v780, 0
        %v804 = vsel %vm308, %v787, 0
        %v806 = vsel %vm308, %v794, 0
        %v808 = vsel %vm308, %v801, 0
        %vm810 = vcmask 1043456
        %v812 = vsel %vm810, %v734, 0
        %814 = vmatprep.subr.mxu0 0.0
        %815 = vmatpush1.msra.mxu0 %v812
        %816 = vmatprep.subr.mxu0 0.0
        %817 = vmatpush1.msra.mxu0 0.0
        %818 = vmatprep.subr.mxu0 0.0
        %819 = vmatpush1.msra.mxu0 0.0
        %820 = vmatprep.subr.mxu0 0.0
        %821 = vmatpush1.msra.mxu0 0.0
        %822 = vmatprep.subr.mxu0 0.0
        %823 = vmatpush1.msra.mxu0 0.0
        %824 = vmatprep.subr.mxu0 0.0
        %825 = vmatpush1.msra.mxu0 0.0
        %826 = vmatprep.subr.mxu0 0.0
        %827 = vmatpush1.msra.mxu0 0.0
        %828 = vmatprep.subr.mxu0 0.0
        %829 = vmatpush1.msra.mxu0 0.0
        %830 = vmatprep.subr.mxu0 0.0
        %831 = vmatpush1.msra.mxu0 0.0
        %832 = vmatprep.subr.mxu0 0.0
        %833 = vmatpush1.msra.mxu0 0.0
        %834 = vmatprep.subr.mxu0 0.0
        %835 = vmatpush1.msra.mxu0 0.0
        %836 = vmatprep.subr.mxu0 0.0
        %837 = vmatpush1.msra.mxu0 0.0
        %838 = vmatprep.subr.mxu0 0.0
        %839 = vmatpush1.msra.mxu0 0.0
        %840 = vmatprep.subr.mxu0 0.0
        %841 = vmatpush1.msra.mxu0 0.0
        %842 = vmatprep.subr.mxu0 0.0
        %843 = vmatpush1.msra.mxu0 0.0
        %844 = vmatprep.subr.mxu0 0.0
        %845 = vmatpush1.msra.mxu0 0.0
        %846 = vmatprep.subr.mxu0 0.0
        %847 = vmatpush1.msra.mxu0 0.0
        %848 = vmatprep.subr.mxu0 0.0
        %849 = vmatpush1.msra.mxu0 0.0
        %850 = vmatprep.subr.mxu0 0.0
        %851 = vmatpush1.msra.mxu0 0.0
        %852 = vmatprep.subr.mxu0 0.0
        %853 = vmatpush1.msra.mxu0 0.0
        %854 = vmatprep.subr.mxu0 0.0
        %855 = vmatpush1.msra.mxu0 0.0
        %856 = vmatprep.subr.mxu0 0.0
        %857 = vmatpush1.msra.mxu0 0.0
        %858 = vmatprep.subr.mxu0 0.0
        %859 = vmatpush1.msra.mxu0 0.0
        %860 = vmatprep.subr.mxu0 0.0
        %861 = vmatpush1.msra.mxu0 0.0
        %862 = vmatprep.subr.mxu0 0.0
        %863 = vmatpush1.msra.mxu0 0.0
        %864 = vmatprep.subr.mxu0 0.0
        %865 = vmatpush1.msra.mxu0 0.0
        %866 = vmatprep.subr.mxu0 0.0
        %867 = vmatpush1.msra.mxu0 0.0
        %868 = vmatprep.subr.mxu0 0.0
        %869 = vmatpush1.msra.mxu0 0.0
        %870 = vmatprep.subr.mxu0 0.0
        %871 = vmatpush1.msra.mxu0 0.0
        %872 = vmatprep.subr.mxu0 0.0
        %873 = vmatpush1.msra.mxu0 0.0
        %874 = vmatprep.subr.mxu0 0.0
        %875 = vmatpush1.msra.mxu0 0.0
        %876 = vmatprep.subr.mxu0 0.0
        %877 = vmatpush1.msra.mxu0 0.0
        %878 = vmatprep.mubr.f32.mxu0 0.0
        %879 = vmatmul.mubr.f32.gmra.mrb[0].mxu0 %v802
        %v880 = vpop.f32.mrb[0].mxu0
        %v881 = vadd.f32 0.0, %v880
        %v882 = vpop.f32.mrb[0].mxu0
        %883 = vmatprep.mubr.f32.mxu0 0.0
        %884 = vmatmul.mubr.f32.gmra.mrb[0].mxu0 %v804
        %v885 = vpop.f32.mrb[0].mxu0
        %v886 = vadd.f32 0.0, %v885
        %v887 = vpop.f32.mrb[0].mxu0
        %888 = vmatprep.mubr.f32.mxu0 0.0
        %889 = vmatmul.mubr.f32.gmra.mrb[0].mxu0 %v806
        %v890 = vpop.f32.mrb[0].mxu0
        %v891 = vadd.f32 0.0, %v890
        %v892 = vpop.f32.mrb[0].mxu0
        %893 = vmatprep.mubr.f32.mxu0 0.0
        %894 = vmatmul.mubr.f32.gmra.mrb[0].mxu0 %v808
        %v895 = vpop.f32.mrb[0].mxu0
        %v896 = vadd.f32 0.0, %v895
        %v897 = vpop.f32.mrb[0].mxu0
        %898 = vdwg.mxu0
        %vm899 = vcmask 64512
        %900 = vst.msk [vmem:[%s217] sm:$0xff] %vm899, %v881
        %901 = vst.msk [vmem:[%s217 + $0x8] sm:$0xff] %vm899, %v886
        %902 = vst.msk [vmem:[%s217 + $0x10] sm:$0xff] %vm899, %v891
        %903 = vst.msk [vmem:[%s217 + $0x18] sm:$0xff] %vm899, %v896
        %s904 = sand.u32 %s131, 1
        %s905 = scalar_lea.sflag [#allocation3], %s904
        %s906 = sand.u32 %s131, 1
        %s907 = smul.addr %s906, 32
        %s908 = scalar_lea.vmem [#allocation2], %s907
        // Predicated region
        $region37: #{tpu_custom_call.1} parent=35 // pred_check
          %p909 = pneg %p141
        $region38: #{tpu_custom_call.1} parent=35 // pred_check_branch
          %911 = sbr.rel (%p909) target = $region40
        $region39: #{tpu_custom_call.1} parent=35 // pred_region
          %s912 = smul.u32 4, %s23
          %s914 = ssub.s32 512, 512
          %915 = vsyncadd %s905, %s914
          %s916 = smul.addr %s22, 8
          %s917 = sadd.s32 %s912, %s916
          %s918 = smul.addr %s917, 128
          %s919 = scalar_lea.hbm %s4, %s918
          %s920 = sshll.u32 %s908, 4
          %s921 = int_to_ptr.vmem [resolvable:$true] %s920
          %926 = dma.vmem_to_hbm [thread:$0]  %s921, 512, %s919, %s905, 128, 128, 8
        $region40: #{tpu_custom_call.1} parent=35 // pred_fallthru
          _
      $region36: #{tpu_custom_call.1} parent=5 // pred_fallthru
        _
      %p927 = scmp.le.s32.totalorder 2, %s13
      // Predicated region
      $region41: #{tpu_custom_call.1} parent=5 // pred_check
        %p928 = pneg %p927
      $region42: #{tpu_custom_call.1} parent=5 // pred_check_branch
        %930 = sbr.rel (%p928) target = $region44
      $region43: #{tpu_custom_call.1} parent=5 // pred_region
        %s931 = ssub.s32 %s13, 2
        // Predicated region
        $region45: #{tpu_custom_call.1} parent=43 // pred_check
          %p932 = pneg %p147
        $region46: #{tpu_custom_call.1} parent=43 // pred_check_branch
          %934 = sbr.rel (%p932) target = $region48
        $region47: #{tpu_custom_call.1} parent=43 // pred_region
          %s935 = sand.u32 %s132, 1
          %s936 = scalar_lea.sflag [#allocation3], %s935
          %s937 = sand.u32 %s132, 1
          %s938 = smul.addr %s937, 32
          %s939 = scalar_lea.vmem [#allocation2], %s938
          %940 = dma.done %s936, 512
        $region48: #{tpu_custom_call.1} parent=43 // pred_fallthru
          _
      $region44: #{tpu_custom_call.1} parent=5 // pred_fallthru
        _
    $region6: #{tpu_custom_call.1} parent=1 // loop_footer
      %s17 = sadd.s32 1, %s13
    $region7: #{tpu_custom_call.1} parent=1 // loop_footer_branch
      %12 = sbr.rel target = $region3
    $region8: #{tpu_custom_call.1} parent=1 // loop_exit
      _
    %941 = vsyncpa [#allocation3], 1
    %s942 = scalar_lea.sflag [#allocation3], 1
    %943 = vsyncpa %s942, 1

</llo_original>
